<compile_context>
chip_gen: v7x
topology: tpu7x:2x2x1
jax: 0.10.0
libtpu: 0.0.40
codegen_flags: <defaults>
</compile_context>

<pallas_src>
import jax
import jax.numpy as jnp
from jax.experimental import pallas as pl
from jax.experimental.pallas import tpu as pltpu


def _discriminator_kernel(x_ref, a_ref, w1x_ref, w1a_ref, b1_ref, w2_ref,
                          b2_ref, o_ref, acc_ref):
    j = pl.program_id(1)

    @pl.when(j == 0)
    def _():
        acc_ref[...] = jnp.zeros_like(acc_ref)

    # fc1 for this H tile: bf16 operands on the MXU, f32 accumulation.
    h = jnp.dot(x_ref[...], w1x_ref[...], preferred_element_type=jnp.float32)
    h = h + jnp.dot(a_ref[...], w1a_ref[...], preferred_element_type=jnp.float32)
    h = h + b1_ref[...]                       # (1, bh) f32 bias, broadcast
    h = jnp.maximum(h, 0.2 * h)               # leaky_relu(0.2): mul+max on the VPU

    # fc2 contribution of this H tile. Defer the cross-lane reduce: fold the
    # bh lanes into a (bm, 128) per-lane f32 accumulator with VPU adds only
    # (unmasked stores, no per-tile XLU work).
    hw = h * w2_ref[...]                      # (bm, bh) f32
    bh = hw.shape[-1]
    if bh % 128 == 0 and bh >= 128:
        partial = hw[:, 0:128]
        for c in range(1, bh // 128):         # lane-aligned static slices: free views
            partial = partial + hw[:, c * 128:(c + 1) * 128]
        acc_ref[...] += partial
    else:
        # Rare fallback (hidden not a multiple of 128): reduce now into lane 0.
        acc_ref[:, 0:1] += jnp.sum(hw, axis=-1, keepdims=True)

    @pl.when(j == pl.num_programs(1) - 1)
    def _():
        # Single 128 -> 1 XLU reduce per batch tile, then scalar bias from SMEM.
        d = jnp.sum(acc_ref[...], axis=-1, keepdims=True) + b2_ref[0]
        # Lane-dense store: broadcast across the 128-lane slab (unmasked vst);
        # the wrapper takes column 0.
        o_ref[...] = jnp.broadcast_to(d, o_ref.shape).astype(o_ref.dtype)


def _round_up(n, m):
    return ((n + m - 1) // m) * m


def _vmem_limit_bytes():
    # ~80% of physical VMEM, capped at 100 MiB:
    #   v7x (64 MiB physical)  -> ~51 MiB
    #   v5e/v6e (128 MiB)      -> 100 MiB
    try:
        cap = pltpu.get_tpu_info().vmem_capacity_bytes
        return min(int(cap * 0.80), 100 * 1024 * 1024)
    except Exception:
        return 48 * 1024 * 1024   # safe on every chip generation


def prepare_discriminator_params(w1, b1, w2, b2, x_dim,
                                 matmul_dtype=jnp.bfloat16):
    """One-time parameter prep (split + cast). Call once at setup, not per step.

    w1: (x_dim + a_dim, hidden)  (PyTorch weight transposed to (in, out))
    b1: (hidden,), w2: (hidden, 1), b2: (1,)
    """
    D, H = w1.shape
    return dict(
        w1x=w1[:x_dim, :].astype(matmul_dtype),    # (x_dim, H)
        w1a=w1[x_dim:, :].astype(matmul_dtype),    # (a_dim, H)
        b1=b1.reshape(1, H).astype(jnp.float32),
        w2=w2.reshape(1, H).astype(jnp.float32),
        b2=b2.reshape(1).astype(jnp.float32),
    )


def discriminator_forward(x, a, params, *, block_b=256, block_h=None):
    """Pallas implementation of Discriminator.forward(x, a).

    x: (B, x_dim), a: (B, a_dim); params from prepare_discriminator_params.
    Returns d: (B, 1) float32.

    block_b: batch tile (multiple of 8; capped so >= 2 tiles when B allows,
             for v7x megacore sharding). Ragged tails use a partial last block.
    block_h: optional H tile (multiple of 128 dividing hidden). Default None
             keeps W1 fully VMEM resident (single-buffered, one HBM fetch) —
             the preferred configuration on all chips. If streaming is ever
             required, use block_h >= 512.
    """
    B, x_dim = x.shape
    Ba, a_dim = a.shape
    assert B == Ba, "x and a must share the batch dimension"
    w1x, w1a = params["w1x"], params["w1a"]
    assert w1x.shape[0] == x_dim and w1a.shape[0] == a_dim
    H = w1x.shape[1]
    matmul_dtype = w1x.dtype

    # --- batch tile ---
    bm = max(8, _round_up(min(int(block_b), _round_up(B, 8)), 8))
    # Keep >= 2 batch tiles when the batch allows it (both v7x TensorCores busy).
    if B > 8 and (B + bm - 1) // bm < 2:
        bm = max(8, _round_up((B + 1) // 2, 8))
    nb = (B + bm - 1) // bm
    B_pad = nb * bm            # output rows; padded rows are sliced off below

    # --- hidden tile ---
    if block_h is None:
        bh = H
    else:
        bh = int(block_h)
        if bh >= H or H % bh != 0 or bh % 128 != 0:
            bh = H
    resident = (bh == H)

    def wspec(shape, index_map):
        if resident:
            # Block index never changes across the grid: single-buffer the
            # weights (saves a full second copy of W1 in VMEM, one DMA total).
            return pl.BlockSpec(shape, index_map, pipeline_mode=pl.Buffered(1))
        return pl.BlockSpec(shape, index_map)

    grid = (nb, H // bh)

    xp = x.astype(matmul_dtype)
    ap = a.astype(matmul_dtype)

    out = pl.pallas_call(
        _discriminator_kernel,
        out_shape=jax.ShapeDtypeStruct((B_pad, 128), jnp.float32),
        grid_spec=pltpu.PrefetchScalarGridSpec(
            num_scalar_prefetch=0,
            grid=grid,
            in_specs=[
                # activations: tile over batch, full feature dim (ragged last
                # block reads OOB rows; their outputs are discarded).
                pl.BlockSpec((bm, x_dim), lambda i, j: (i, 0)),
                pl.BlockSpec((bm, a_dim), lambda i, j: (i, 0)),
                # weights / fc1 bias / fc2 row: tile over H only.
                wspec((x_dim, bh), lambda i, j: (0, j)),
                wspec((a_dim, bh), lambda i, j: (0, j)),
                wspec((1, bh), lambda i, j: (0, j)),
                wspec((1, bh), lambda i, j: (0, j)),
                # fc2 bias: single scalar, lives in SMEM.
                pl.BlockSpec(memory_space=pltpu.MemorySpace.SMEM),
            ],
            # Lane-dense output slab; block index constant along the H axis so
            # it stays resident and is written back once per batch tile.
            out_specs=pl.BlockSpec((bm, 128), lambda i, j: (i, 0)),
            scratch_shapes=[pltpu.VMEM((bm, 128), jnp.float32)],
        ),
        compiler_params=pltpu.CompilerParams(
            dimension_semantics=("parallel", "arbitrary"),
            vmem_limit_bytes=_vmem_limit_bytes(),
        ),
    )(xp, ap, w1x, w1a, params["b1"], params["w2"], params["b2"])

    return out[:B, 0:1]


def _xavier_uniform(key, shape):
    # matches torch.nn.init.xavier_uniform_ for a 2-D weight (fan_in, fan_out)
    fan_in, fan_out = shape[0], shape[1]
    limit = jnp.sqrt(6.0 / (fan_in + fan_out))
    return jax.random.uniform(key, shape, jnp.float32, minval=-limit, maxval=limit)


def _reference_forward(x, a, w1, b1, w2, b2, matmul_dtype=jnp.bfloat16):
    # Pure-JAX reference with the same mixed precision as the kernel
    # (bf16 matmul inputs, f32 accumulation / bias / activation).
    xa = jnp.concatenate([x.astype(matmul_dtype), a.astype(matmul_dtype)], axis=1)
    h = jnp.dot(xa, w1.astype(matmul_dtype), preferred_element_type=jnp.float32)
    h = h + b1.astype(jnp.float32)
    h = jnp.where(h > 0, h, 0.2 * h)
    d = jnp.dot(h, w2.astype(jnp.float32), preferred_element_type=jnp.float32)
    return d + b2.astype(jnp.float32)


if __name__ == "__main__":
    # Small, forward-consistent shapes (production: x_dim~2048, hidden=4096).
    B = 64        # batch
    x_dim = 32    # visual feature dim
    a_dim = 16    # attribute dim
    hidden = 256  # hidden_dim

    key = jax.random.PRNGKey(0)
    kx, ka, kw1, kb1, kw2, kb2 = jax.random.split(key, 6)

    x = jax.random.normal(kx, (B, x_dim), jnp.float32)
    a = jax.random.normal(ka, (B, a_dim), jnp.float32)

    # Xavier weights stored (in, out) so the kernel computes y = x @ W + b,
    # small random biases so the bias path is actually exercised.
    w1 = _xavier_uniform(kw1, (x_dim + a_dim, hidden))
    b1 = 0.1 * jax.random.normal(kb1, (hidden,), jnp.float32)
    w2 = _xavier_uniform(kw2, (hidden, 1))
    b2 = 0.1 * jax.random.normal(kb2, (1,), jnp.float32)

    # One-time parameter prep (split W1, cast to bf16).
    params = prepare_discriminator_params(w1, b1, w2, b2, x_dim)

    # 1) Default path: resident, single-buffered weights; batch split into
    #    >= 2 tiles (megacore); deferred fc2 reduce.
    d = discriminator_forward(x, a, params)
    d = jax.block_until_ready(d)
    d_ref = _reference_forward(x, a, w1, b1, w2, b2)
    assert d.shape == (B, 1)
    assert jnp.allclose(d, d_ref, atol=5e-3, rtol=5e-3), "mismatch (resident)"

    # 2) Ragged batch (partial last input block, no jnp.pad) with resident weights.
    Bt = 37
    dt = discriminator_forward(x[:Bt], a[:Bt], params)
    dt = jax.block_until_ready(dt)
    dt_ref = _reference_forward(x[:Bt], a[:Bt], w1, b1, w2, b2)
    assert dt.shape == (Bt, 1)
    assert jnp.allclose(dt, dt_ref, atol=5e-3, rtol=5e-3), "mismatch (ragged batch)"

    # 3) H-tiled streaming path (exercises the cross-H accumulator; production
    #    would use block_h >= 512, here hidden is only 256).
    ds = discriminator_forward(x, a, params, block_b=256, block_h=128)
    ds = jax.block_until_ready(ds)
    assert ds.shape == (B, 1)
    assert jnp.allclose(ds, d_ref, atol=5e-3, rtol=5e-3), "mismatch (H-tiled)"

    print("KERNEL_OK")
</pallas_src>

<mosaic_0001>
module attributes {stable_mosaic.version = 11 : i64} {
  func.func @_discriminator_kernel(%arg0: i32, %arg1: i32, %arg2: memref<32x32xbf16, #tpu.memory_space<vmem>>, %arg3: memref<32x16xbf16, #tpu.memory_space<vmem>>, %arg4: memref<32x256xbf16, #tpu.memory_space<vmem>>, %arg5: memref<16x256xbf16, #tpu.memory_space<vmem>>, %arg6: memref<1x256xf32, #tpu.memory_space<vmem>>, %arg7: memref<1x256xf32, #tpu.memory_space<vmem>>, %arg8: memref<1xf32, #tpu.memory_space<smem>>, %arg9: memref<32x128xf32, #tpu.memory_space<vmem>>, %arg10: memref<32x128xf32, #tpu.memory_space<vmem>>) attributes {dimension_semantics = [#tpu.dimension_semantics<parallel>, #tpu.dimension_semantics<arbitrary>], iteration_bounds = array<i64: 2, 1>, scalar_prefetch = 0 : i64, scratch_operands = 1 : i64, tpu.core_type = #tpu.core_type<tc>, window_params = [{transform_indices = @transform_0, window_bounds = array<i64: 32, 32>}, {transform_indices = @transform_1, window_bounds = array<i64: 32, 16>}, {pipeline_mode = #tpu.pipeline_mode<synchronous>, transform_indices = @transform_2, window_bounds = array<i64: 32, 256>}, {pipeline_mode = #tpu.pipeline_mode<synchronous>, transform_indices = @transform_3, window_bounds = array<i64: 16, 256>}, {pipeline_mode = #tpu.pipeline_mode<synchronous>, transform_indices = @transform_4, window_bounds = array<i64: 1, 256>}, {pipeline_mode = #tpu.pipeline_mode<synchronous>, transform_indices = @transform_5, window_bounds = array<i64: 1, 256>}, {transform_indices = @transform_6, window_bounds = array<i64: 1>}, {transform_indices = @transform_7, window_bounds = array<i64: 32, 128>}]} {
    %c0_i32 = arith.constant 0 : i32
    %0 = arith.cmpi eq, %arg1, %c0_i32 : i32
    %1 = arith.extui %0 : i1 to i32
    %c0_i32_0 = arith.constant 0 : i32
    %2 = arith.cmpi ne, %1, %c0_i32_0 : i32
    scf.if %2 {
      %cst_20 = arith.constant 0.000000e+00 : f32
      %28 = vector.broadcast %cst_20 : f32 to vector<32x128xf32>
      %c0_21 = arith.constant 0 : index
      %c0_22 = arith.constant 0 : index
      %29 = vector.load %arg10[%c0_21, %c0_22] : memref<32x128xf32, #tpu.memory_space<vmem>>, vector<32x128xf32>
      tpu.vector_store %arg10[%c0_21, %c0_22], %28 {strides = array<i32>} : memref<32x128xf32, #tpu.memory_space<vmem>>, vector<32x128xf32>,
    } else {
    }
    %c0 = arith.constant 0 : index
    %c0_1 = arith.constant 0 : index
    %3 = vector.load %arg2[%c0, %c0_1] : memref<32x32xbf16, #tpu.memory_space<vmem>>, vector<32x32xbf16>
    %c0_2 = arith.constant 0 : index
    %c0_3 = arith.constant 0 : index
    %4 = vector.load %arg4[%c0_2, %c0_3] : memref<32x256xbf16, #tpu.memory_space<vmem>>, vector<32x256xbf16>
    %cst = arith.constant dense<0.000000e+00> : vector<32x256xf32>
    %5 = tpu.matmul %3, %4, %cst {dimension_numbers = #tpu.dot_dimension_numbers<[1], [0], [0], [1], [0, 0, 1, 1], [], []>} : vector<32x32xbf16>, vector<32x256xbf16>, vector<32x256xf32> -> vector<32x256xf32>
    %c0_4 = arith.constant 0 : index
    %c0_5 = arith.constant 0 : index
    %6 = vector.load %arg3[%c0_4, %c0_5] : memref<32x16xbf16, #tpu.memory_space<vmem>>, vector<32x16xbf16>
    %c0_6 = arith.constant 0 : index
    %c0_7 = arith.constant 0 : index
    %7 = vector.load %arg5[%c0_6, %c0_7] : memref<16x256xbf16, #tpu.memory_space<vmem>>, vector<16x256xbf16>
    %cst_8 = arith.constant dense<0.000000e+00> : vector<32x256xf32>
    %8 = tpu.matmul %6, %7, %cst_8 {dimension_numbers = #tpu.dot_dimension_numbers<[1], [0], [0], [1], [0, 0, 1, 1], [], []>} : vector<32x16xbf16>, vector<16x256xbf16>, vector<32x256xf32> -> vector<32x256xf32>
    %9 = arith.addf %5, %8 : vector<32x256xf32>
    %c0_9 = arith.constant 0 : index
    %c0_10 = arith.constant 0 : index
    %10 = vector.load %arg6[%c0_9, %c0_10] : memref<1x256xf32, #tpu.memory_space<vmem>>, vector<1x256xf32>
    %11 = vector.broadcast %10 : vector<1x256xf32> to vector<32x256xf32>
    %12 = arith.addf %9, %11 : vector<32x256xf32>
    %cst_11 = arith.constant 2.000000e-01 : f32
    %13 = vector.broadcast %cst_11 : f32 to vector<32x256xf32>
    %14 = arith.mulf %13, %12 : vector<32x256xf32>
    %15 = arith.maximumf %12, %14 : vector<32x256xf32>
    %c0_12 = arith.constant 0 : index
    %c0_13 = arith.constant 0 : index
    %16 = vector.load %arg7[%c0_12, %c0_13] : memref<1x256xf32, #tpu.memory_space<vmem>>, vector<1x256xf32>
    %17 = vector.broadcast %16 : vector<1x256xf32> to vector<32x256xf32>
    %18 = arith.mulf %15, %17 : vector<32x256xf32>
    %19 = vector.extract_strided_slice %18 {offsets = [0, 0], sizes = [32, 128], strides = [1, 1]} : vector<32x256xf32> to vector<32x128xf32>
    %20 = vector.extract_strided_slice %18 {offsets = [0, 128], sizes = [32, 128], strides = [1, 1]} : vector<32x256xf32> to vector<32x128xf32>
    %21 = arith.addf %19, %20 : vector<32x128xf32>
    %c0_14 = arith.constant 0 : index
    %c0_15 = arith.constant 0 : index
    %22 = vector.load %arg10[%c0_14, %c0_15] : memref<32x128xf32, #tpu.memory_space<vmem>>, vector<32x128xf32>
    %23 = arith.addf %22, %21 : vector<32x128xf32>
    %c0_16 = arith.constant 0 : index
    %c0_17 = arith.constant 0 : index
    %24 = vector.load %arg10[%c0_16, %c0_17] : memref<32x128xf32, #tpu.memory_space<vmem>>, vector<32x128xf32>
    tpu.vector_store %arg10[%c0_16, %c0_17], %23 {strides = array<i32>} : memref<32x128xf32, #tpu.memory_space<vmem>>, vector<32x128xf32>,
    %c0_i32_18 = arith.constant 0 : i32
    %25 = arith.cmpi eq, %arg1, %c0_i32_18 : i32
    %26 = arith.extui %25 : i1 to i32
    %c0_i32_19 = arith.constant 0 : i32
    %27 = arith.cmpi ne, %26, %c0_i32_19 : i32
    scf.if %27 {
      %c0_20 = arith.constant 0 : index
      %c0_21 = arith.constant 0 : index
      %28 = vector.load %arg10[%c0_20, %c0_21] : memref<32x128xf32, #tpu.memory_space<vmem>>, vector<32x128xf32>
      %cst_22 = arith.constant dense<0.000000e+00> : vector<32xf32>
      %29 = vector.multi_reduction <add>, %28, %cst_22 [1] : vector<32x128xf32> to vector<32xf32>
      %30 = vector.shape_cast %29 : vector<32xf32> to vector<32x1xf32>
      %c0_23 = arith.constant 0 : index
      %31 = memref.load %arg8[%c0_23] : memref<1xf32, #tpu.memory_space<smem>>
      %32 = vector.broadcast %31 : f32 to vector<32x1xf32>
      %33 = arith.addf %30, %32 : vector<32x1xf32>
      %34 = vector.shape_cast %33 : vector<32x1xf32> to vector<32x1xf32>
      %35 = vector.broadcast %34 : vector<32x1xf32> to vector<32x128xf32>
      %c0_24 = arith.constant 0 : index
      %c0_25 = arith.constant 0 : index
      %36 = vector.load %arg9[%c0_24, %c0_25] : memref<32x128xf32, #tpu.memory_space<vmem>>, vector<32x128xf32>
      tpu.vector_store %arg9[%c0_24, %c0_25], %35 {strides = array<i32>} : memref<32x128xf32, #tpu.memory_space<vmem>>, vector<32x128xf32>,
    } else {
    }
    return
  }
  func.func @transform_0(%arg0: i32, %arg1: i32) -> (i32, i32) {
    %c0_i32 = arith.constant 0 : i32
    %c0_i32_0 = arith.constant 0 : i32
    return %arg0, %c0_i32 : i32, i32
  }
  func.func @transform_1(%arg0: i32, %arg1: i32) -> (i32, i32) {
    %c0_i32 = arith.constant 0 : i32
    %c0_i32_0 = arith.constant 0 : i32
    return %arg0, %c0_i32 : i32, i32
  }
  func.func @transform_2(%arg0: i32, %arg1: i32) -> (i32, i32) {
    %c0_i32 = arith.constant 0 : i32
    %c0_i32_0 = arith.constant 0 : i32
    return %c0_i32, %arg1 : i32, i32
  }
  func.func @transform_3(%arg0: i32, %arg1: i32) -> (i32, i32) {
    %c0_i32 = arith.constant 0 : i32
    %c0_i32_0 = arith.constant 0 : i32
    return %c0_i32, %arg1 : i32, i32
  }
  func.func @transform_4(%arg0: i32, %arg1: i32) -> (i32, i32) {
    %c0_i32 = arith.constant 0 : i32
    %c0_i32_0 = arith.constant 0 : i32
    return %c0_i32, %arg1 : i32, i32
  }
  func.func @transform_5(%arg0: i32, %arg1: i32) -> (i32, i32) {
    %c0_i32 = arith.constant 0 : i32
    %c0_i32_0 = arith.constant 0 : i32
    return %c0_i32, %arg1 : i32, i32
  }
  func.func @transform_6(%arg0: i32, %arg1: i32) -> i32 {
    %c0_i32 = arith.constant 0 : i32
    %c0_i32_0 = arith.constant 0 : i32
    return %c0_i32 : i32
  }
  func.func @transform_7(%arg0: i32, %arg1: i32) -> (i32, i32) {
    %c0_i32 = arith.constant 0 : i32
    %c0_i32_0 = arith.constant 0 : i32
    return %arg0, %c0_i32 : i32, i32
  }
}

</mosaic_0001>

<llo_original>
// kernel: tpu_custom_call.1
$region0: #{tpu_custom_call.1}
  #allocation0 [shape = 'u32[]', space=smem, size = 0x4, offset = 0x4, fixed_abs, tag = 'smem constant byte address 0x4 - core index']
  #allocation1 [shape = 'u32[144,128]{1,0:T(1,128)}', space=vmem, size = 0x12000, scoped, tag = 'internal scratch']
  #allocation2 [shape = 'f32[32,128]{1,0:T(8,128)}', space=vmem, size = 0x4000, scoped, tag = 'scratch operand']
  #allocation3 [shape = 'f32[1]{0:T(128)S(6)}', space=smem, size = 0x200, scoped, tag = 'scoped memory for tpu_custom_call.1']
  %s0 = inlined_call_operand.vmem [shape: bf16[64,32], index: 0, kind: input, shape index: {}]
  %s1 = inlined_call_operand.vmem [shape: bf16[64,16], index: 1, kind: input, shape index: {}]
  %s2 = inlined_call_operand.vmem [shape: bf16[32,256], index: 2, kind: input, shape index: {}]
  %s3 = inlined_call_operand.vmem [shape: bf16[16,256], index: 3, kind: input, shape index: {}]
  %s4 = inlined_call_operand.vmem [shape: f32[1,256], index: 4, kind: input, shape index: {}]
  %s5 = inlined_call_operand.vmem [shape: f32[1,256], index: 5, kind: input, shape index: {}]
  %s6 = inlined_call_operand.<no memory space> [shape: f32[1], index: 6, kind: input, shape index: {}]
  %s7 = inlined_call_operand.hbm [shape: f32[64,128], index: 7, kind: output, shape index: {}]
  %s8 = sld [smem:[#allocation0]]
  $region69: #{tpu_custom_call.1} parent=0
    _
  %s10 = ssub.s32 1, %s8
  %s11 = scalar_select 0, %s10, %s8
  %12 = sst [smem:[#allocation3]] %s6
  $region1: #{tpu_custom_call.1} parent=0
    #allocation4 [shape = 'u8[32768]{0}', space=vmem, size = 0x8000, scoped, tag = 'output window, operand 0']
    #allocation5 [shape = 's32[2]{0}', space=sflag, size = 0x8, scoped, tag = 'scoped memory for tpu_custom_call.1']
    %13 = vsyncpa [#allocation5], 0
    %s14 = scalar_lea.sflag [#allocation5], 1
    %15 = vsyncpa %s14, 0
    loop: start=0, step=1, limit=4
    $region2: #{tpu_custom_call.1} parent=1 // loop_pre_header
      _
    $region3: #{tpu_custom_call.1} parent=1 // loop_header
      %s17 = sphi 0, %s21
      %p18 = scmp.ge.s32.totalorder %s17, 4
      %s24 = sphi 0, %s36
      %s25 = sphi 0, %s32
      %s26 = sphi 0, %s24
      %s27 = sphi 0, %s25
      %s28 = sphi 0, %s26
      %s29 = sphi 0, %s27
      %s39 = sphi 0, %s41
      %s42 = sphi 0, %s39
      %s43 = sphi 0, %s42
      %s59 = sphi 0, %s43
      %s65 = sphi 0, %s67
      %s68 = sphi 0, %s65
      %s69 = sphi 0, %s68
      %s85 = sphi 0, %s69
      %s91 = sphi 0, %s93
      %s94 = sphi 0, %s91
      %s95 = sphi 0, %s94
      %s111 = sphi 0, %s95
      %s117 = sphi 0, %s119
      %s120 = sphi 0, %s117
      %s121 = sphi 0, %s120
      %s137 = sphi 0, %s121
      %s143 = sphi 0, %s145
      %s146 = sphi 0, %s143
      %s147 = sphi 0, %s146
      %s163 = sphi 0, %s147
      %s169 = sphi 0, %s171
      %s172 = sphi 0, %s169
      %s173 = sphi 0, %s172
      %s189 = sphi 0, %s173
      %s193 = sphi 0, %s193
      %s195 = sphi 0, %s193
      %s196 = sphi 0, %s195
      %s210 = sphi 0, %s196
      %s216 = sphi 0, %s218
      %s219 = sphi 0, %s216
      %s220 = sphi 0, %s219
      %s236 = sphi 0, %s220
    $region4: #{tpu_custom_call.1} parent=1 // loop_header_branch
      %20 = sbr.rel (%p18) target = $region8
    $region5: #{tpu_custom_call.1} parent=1 // loop_body
      %s22 = ssub.s32 %s17, 1
      %s23 = ssub.s32 %s17, 2
      %s30 = sadd.s32 1, %s25
      %p31 = scmp.ge.s32.totalorder %s30, 1
      %s32 = scalar_select %p31, 0, %s30
      %s33 = sadd.s32 1, %s24
      %s34 = scalar_select %p31, %s33, %s24
      %p35 = scmp.ge.s32.totalorder %s34, 2
      %s36 = scalar_select %p35, 0, %s34
      %s37 = ssub.s32 %s24, %s36
      %p38 = scmp.eq.s32.totalorder %s37, 0
      %s40 = sadd.s32 %s39, 1
      %s41 = scalar_select %p38, %s39, %s40
      %p44 = pneg %p38
      %p45 = scmp.eq.s32.totalorder %s17, 1
      %p46 = por %p44, %p45
      %p47 = scmp.ne.s32.totalorder %s39, %s42
      %p48 = scmp.eq.s32.totalorder %s17, 0
      %p49 = por %p47, %p48
      %p50 = scmp.ne.s32.totalorder %s39, %s42
      %p51 = scmp.eq.s32.totalorder %s22, 1
      %p52 = por %p50, %p51
      %p53 = scmp.ne.s32.totalorder %s42, %s43
      %p54 = scmp.eq.s32.totalorder %s22, 0
      %p55 = por %p53, %p54
      %p56 = scmp.ne.s32.totalorder %s42, %s43
      %p57 = scmp.eq.s32.totalorder %s23, 1
      %p58 = por %p56, %p57
      %p60 = scmp.ne.s32.totalorder %s43, %s59
      %p61 = scmp.eq.s32.totalorder %s23, 0
      %p62 = por %p60, %p61
      %s63 = ssub.s32 %s24, %s36
      %p64 = scmp.eq.s32.totalorder %s63, 0
      %s66 = sadd.s32 %s65, 1
      %s67 = scalar_select %p64, %s65, %s66
      %p70 = pneg %p64
      %p71 = scmp.eq.s32.totalorder %s17, 1
      %p72 = por %p70, %p71
      %p73 = scmp.ne.s32.totalorder %s65, %s68
      %p74 = scmp.eq.s32.totalorder %s17, 0
      %p75 = por %p73, %p74
      %p76 = scmp.ne.s32.totalorder %s65, %s68
      %p77 = scmp.eq.s32.totalorder %s22, 1
      %p78 = por %p76, %p77
      %p79 = scmp.ne.s32.totalorder %s68, %s69
      %p80 = scmp.eq.s32.totalorder %s22, 0
      %p81 = por %p79, %p80
      %p82 = scmp.ne.s32.totalorder %s68, %s69
      %p83 = scmp.eq.s32.totalorder %s23, 1
      %p84 = por %p82, %p83
      %p86 = scmp.ne.s32.totalorder %s69, %s85
      %p87 = scmp.eq.s32.totalorder %s23, 0
      %p88 = por %p86, %p87
      %s89 = ssub.s32 %s25, %s32
      %p90 = scmp.eq.s32.totalorder %s89, 0
      %s92 = sadd.s32 %s91, 1
      %s93 = scalar_select %p90, %s91, %s92
      %p96 = pneg %p90
      %p97 = scmp.eq.s32.totalorder %s17, 1
      %p98 = por %p96, %p97
      %p99 = scmp.ne.s32.totalorder %s91, %s94
      %p100 = scmp.eq.s32.totalorder %s17, 0
      %p101 = por %p99, %p100
      %p102 = scmp.ne.s32.totalorder %s91, %s94
      %p103 = scmp.eq.s32.totalorder %s22, 1
      %p104 = por %p102, %p103
      %p105 = scmp.ne.s32.totalorder %s94, %s95
      %p106 = scmp.eq.s32.totalorder %s22, 0
      %p107 = por %p105, %p106
      %p108 = scmp.ne.s32.totalorder %s94, %s95
      %p109 = scmp.eq.s32.totalorder %s23, 1
      %p110 = por %p108, %p109
      %p112 = scmp.ne.s32.totalorder %s95, %s111
      %p113 = scmp.eq.s32.totalorder %s23, 0
      %p114 = por %p112, %p113
      %s115 = ssub.s32 %s25, %s32
      %p116 = scmp.eq.s32.totalorder %s115, 0
      %s118 = sadd.s32 %s117, 1
      %s119 = scalar_select %p116, %s117, %s118
      %p122 = pneg %p116
      %p123 = scmp.eq.s32.totalorder %s17, 1
      %p124 = por %p122, %p123
      %p125 = scmp.ne.s32.totalorder %s117, %s120
      %p126 = scmp.eq.s32.totalorder %s17, 0
      %p127 = por %p125, %p126
      %p128 = scmp.ne.s32.totalorder %s117, %s120
      %p129 = scmp.eq.s32.totalorder %s22, 1
      %p130 = por %p128, %p129
      %p131 = scmp.ne.s32.totalorder %s120, %s121
      %p132 = scmp.eq.s32.totalorder %s22, 0
      %p133 = por %p131, %p132
      %p134 = scmp.ne.s32.totalorder %s120, %s121
      %p135 = scmp.eq.s32.totalorder %s23, 1
      %p136 = por %p134, %p135
      %p138 = scmp.ne.s32.totalorder %s121, %s137
      %p139 = scmp.eq.s32.totalorder %s23, 0
      %p140 = por %p138, %p139
      %s141 = ssub.s32 %s25, %s32
      %p142 = scmp.eq.s32.totalorder %s141, 0
      %s144 = sadd.s32 %s143, 1
      %s145 = scalar_select %p142, %s143, %s144
      %p148 = pneg %p142
      %p149 = scmp.eq.s32.totalorder %s17, 1
      %p150 = por %p148, %p149
      %p151 = scmp.ne.s32.totalorder %s143, %s146
      %p152 = scmp.eq.s32.totalorder %s17, 0
      %p153 = por %p151, %p152
      %p154 = scmp.ne.s32.totalorder %s143, %s146
      %p155 = scmp.eq.s32.totalorder %s22, 1
      %p156 = por %p154, %p155
      %p157 = scmp.ne.s32.totalorder %s146, %s147
      %p158 = scmp.eq.s32.totalorder %s22, 0
      %p159 = por %p157, %p158
      %p160 = scmp.ne.s32.totalorder %s146, %s147
      %p161 = scmp.eq.s32.totalorder %s23, 1
      %p162 = por %p160, %p161
      %p164 = scmp.ne.s32.totalorder %s147, %s163
      %p165 = scmp.eq.s32.totalorder %s23, 0
      %p166 = por %p164, %p165
      %s167 = ssub.s32 %s25, %s32
      %p168 = scmp.eq.s32.totalorder %s167, 0
      %s170 = sadd.s32 %s169, 1
      %s171 = scalar_select %p168, %s169, %s170
      %p174 = pneg %p168
      %p175 = scmp.eq.s32.totalorder %s17, 1
      %p176 = por %p174, %p175
      %p177 = scmp.ne.s32.totalorder %s169, %s172
      %p178 = scmp.eq.s32.totalorder %s17, 0
      %p179 = por %p177, %p178
      %p180 = scmp.ne.s32.totalorder %s169, %s172
      %p181 = scmp.eq.s32.totalorder %s22, 1
      %p182 = por %p180, %p181
      %p183 = scmp.ne.s32.totalorder %s172, %s173
      %p184 = scmp.eq.s32.totalorder %s22, 0
      %p185 = por %p183, %p184
      %p186 = scmp.ne.s32.totalorder %s172, %s173
      %p187 = scmp.eq.s32.totalorder %s23, 1
      %p188 = por %p186, %p187
      %p190 = scmp.ne.s32.totalorder %s173, %s189
      %p191 = scmp.eq.s32.totalorder %s23, 0
      %p192 = por %p190, %p191
      %s194 = sadd.s32 %s193, 1
      %p197 = scmp.eq.s32.totalorder %s17, 1
      %p198 = scmp.ne.s32.totalorder %s193, %s195
      %p199 = scmp.eq.s32.totalorder %s17, 0
      %p200 = por %p198, %p199
      %p201 = scmp.ne.s32.totalorder %s193, %s195
      %p202 = scmp.eq.s32.totalorder %s22, 1
      %p203 = por %p201, %p202
      %p204 = scmp.ne.s32.totalorder %s195, %s196
      %p205 = scmp.eq.s32.totalorder %s22, 0
      %p206 = por %p204, %p205
      %p207 = scmp.ne.s32.totalorder %s195, %s196
      %p208 = scmp.eq.s32.totalorder %s23, 1
      %p209 = por %p207, %p208
      %p211 = scmp.ne.s32.totalorder %s196, %s210
      %p212 = scmp.eq.s32.totalorder %s23, 0
      %p213 = por %p211, %p212
      %s214 = ssub.s32 %s24, %s36
      %p215 = scmp.eq.s32.totalorder %s214, 0
      %s217 = sadd.s32 %s216, 1
      %s218 = scalar_select %p215, %s216, %s217
      %p221 = pneg %p215
      %p222 = scmp.eq.s32.totalorder %s17, 1
      %p223 = por %p221, %p222
      %p224 = scmp.ne.s32.totalorder %s216, %s219
      %p225 = scmp.eq.s32.totalorder %s17, 0
      %p226 = por %p224, %p225
      %p227 = scmp.ne.s32.totalorder %s216, %s219
      %p228 = scmp.eq.s32.totalorder %s22, 1
      %p229 = por %p227, %p228
      %p230 = scmp.ne.s32.totalorder %s219, %s220
      %p231 = scmp.eq.s32.totalorder %s22, 0
      %p232 = por %p230, %p231
      %p233 = scmp.ne.s32.totalorder %s219, %s220
      %p234 = scmp.eq.s32.totalorder %s23, 1
      %p235 = por %p233, %p234
      %p237 = scmp.ne.s32.totalorder %s220, %s236
      %p238 = scmp.eq.s32.totalorder %s23, 0
      %p239 = por %p237, %p238
      %p240 = scmp.le.s32.totalorder 1, %s17
      %p241 = scmp.lt.s32.totalorder %s17, 3
      %p242 = pnand %p240, %p241
      %p243 = pneg %p242
      // Predicated region
      $region9: #{tpu_custom_call.1} parent=5 // pred_check
        _
      $region10: #{tpu_custom_call.1} parent=5 // pred_check_branch
        %245 = sbr.rel (%p242) target = $region12
      $region11: #{tpu_custom_call.1} parent=5 // pred_region
        %s246 = ssub.s32 %s17, 1
        // Predicated region
        $region13: #{tpu_custom_call.1} parent=11 // pred_check
          %p247 = pneg %p107
        $region14: #{tpu_custom_call.1} parent=11 // pred_check_branch
          %249 = sbr.rel (%p247) target = $region16
        $region15: #{tpu_custom_call.1} parent=11 // pred_region
          %s250 = smul.u32 2, %s27
          %p251 = scmp.lt.s32.totalorder %s250, 1
          %s252 = scalar_select %p251, %s250, 1
          %s253 = smul.addr %s252, 4
          %s254 = scalar_lea.vmem %s2, %s253
          %s255 = smul.u32 2, %s27
        $region16: #{tpu_custom_call.1} parent=11 // pred_fallthru
          _
        // Predicated region
        $region17: #{tpu_custom_call.1} parent=11 // pred_check
          %p256 = pneg %p133
        $region18: #{tpu_custom_call.1} parent=11 // pred_check_branch
          %258 = sbr.rel (%p256) target = $region20
        $region19: #{tpu_custom_call.1} parent=11 // pred_region
          %s259 = smul.u32 2, %s27
          %p260 = scmp.lt.s32.totalorder %s259, 1
          %s261 = scalar_select %p260, %s259, 1
          %s262 = smul.addr %s261, 4
          %s263 = scalar_lea.vmem %s3, %s262
          %s264 = smul.u32 2, %s27
        $region20: #{tpu_custom_call.1} parent=11 // pred_fallthru
          _
        // Predicated region
        $region21: #{tpu_custom_call.1} parent=11 // pred_check
          %p265 = pneg %p159
        $region22: #{tpu_custom_call.1} parent=11 // pred_check_branch
          %267 = sbr.rel (%p265) target = $region24
        $region23: #{tpu_custom_call.1} parent=11 // pred_region
          %s268 = smul.u32 2, %s27
          %p269 = scmp.lt.s32.totalorder %s268, 1
          %s270 = scalar_select %p269, %s268, 1
          %s271 = scalar_lea.vmem %s4, %s270
          %s272 = smul.u32 2, %s27
        $region24: #{tpu_custom_call.1} parent=11 // pred_fallthru
          _
        // Predicated region
        $region25: #{tpu_custom_call.1} parent=11 // pred_check
          %p273 = pneg %p185
        $region26: #{tpu_custom_call.1} parent=11 // pred_check_branch
          %275 = sbr.rel (%p273) target = $region28
        $region27: #{tpu_custom_call.1} parent=11 // pred_region
          %s276 = smul.u32 2, %s27
          %p277 = scmp.lt.s32.totalorder %s276, 1
          %s278 = scalar_select %p277, %s276, 1
          %s279 = scalar_lea.vmem %s5, %s278
          %s280 = smul.u32 2, %s27
        $region28: #{tpu_custom_call.1} parent=11 // pred_fallthru
          _
        // Predicated region
        $region29: #{tpu_custom_call.1} parent=11 // pred_check
          %p281 = pneg %p206
        $region30: #{tpu_custom_call.1} parent=11 // pred_check_branch
          %283 = sbr.rel (%p281) target = $region32
        $region31: #{tpu_custom_call.1} parent=11 // pred_region
          _
        $region32: #{tpu_custom_call.1} parent=11 // pred_fallthru
          _
      $region12: #{tpu_custom_call.1} parent=5 // pred_fallthru
        _
      %p284 = scmp.lt.s32.totalorder %s17, 2
      // Predicated region
      $region33: #{tpu_custom_call.1} parent=5 // pred_check
        %p285 = pneg %p284
      $region34: #{tpu_custom_call.1} parent=5 // pred_check_branch
        %287 = sbr.rel (%p285) target = $region36
      $region35: #{tpu_custom_call.1} parent=5 // pred_region
        // Predicated region
        $region37: #{tpu_custom_call.1} parent=35 // pred_check
          %p288 = pneg %p49
        $region38: #{tpu_custom_call.1} parent=35 // pred_check_branch
          %290 = sbr.rel (%p288) target = $region40
        $region39: #{tpu_custom_call.1} parent=35 // pred_region
          %s291 = smul.u32 4, %s24
          %p292 = scmp.lt.s32.totalorder %s291, 7
          %s293 = scalar_select %p292, %s291, 7
          %s294 = smul.addr %s293, 4
          %s295 = scalar_lea.vmem %s0, %s294
          %s296 = smul.u32 4, %s24
        $region40: #{tpu_custom_call.1} parent=35 // pred_fallthru
          _
        // Predicated region
        $region41: #{tpu_custom_call.1} parent=35 // pred_check
          %p297 = pneg %p75
        $region42: #{tpu_custom_call.1} parent=35 // pred_check_branch
          %299 = sbr.rel (%p297) target = $region44
        $region43: #{tpu_custom_call.1} parent=35 // pred_region
          %s300 = smul.u32 4, %s24
          %p301 = scmp.lt.s32.totalorder %s300, 7
          %s302 = scalar_select %p301, %s300, 7
          %s303 = smul.addr %s302, 4
          %s304 = scalar_lea.vmem %s1, %s303
          %s305 = smul.u32 4, %s24
        $region44: #{tpu_custom_call.1} parent=35 // pred_fallthru
          _
      $region36: #{tpu_custom_call.1} parent=5 // pred_fallthru
        _
      %p306 = scmp.le.s32.totalorder 1, %s17
      %p307 = scmp.lt.s32.totalorder %s17, 3
      %p308 = pnand %p306, %p307
      %p309 = pneg %p308
      // Predicated region
      $region45: #{tpu_custom_call.1} parent=5 // pred_check
        _
      $region46: #{tpu_custom_call.1} parent=5 // pred_check_branch
        %311 = sbr.rel (%p308) target = $region48
      $region47: #{tpu_custom_call.1} parent=5 // pred_region
        %s312 = ssub.s32 %s17, 1
        %s313 = smul.u32 4, %s26
        %p314 = scmp.lt.s32.totalorder %s313, 7
        %s315 = scalar_select %p314, %s313, 7
        %s316 = smul.addr %s315, 4
        %s317 = scalar_lea.vmem %s0, %s316
        %p318 = pneg %p55
        %p319 = pneg %p52
        %s320 = smul.u32 4, %s26
        %p321 = scmp.lt.s32.totalorder %s320, 7
        %s322 = scalar_select %p321, %s320, 7
        %s323 = smul.addr %s322, 4
        %s324 = scalar_lea.vmem %s1, %s323
        %p325 = pneg %p81
        %p326 = pneg %p78
        %s327 = smul.u32 2, %s27
        %p328 = scmp.lt.s32.totalorder %s327, 1
        %s329 = scalar_select %p328, %s327, 1
        %s330 = smul.addr %s329, 4
        %s331 = scalar_lea.vmem %s2, %s330
        %p332 = pneg %p107
        %p333 = pneg %p104
        %s334 = smul.u32 2, %s27
        %p335 = scmp.lt.s32.totalorder %s334, 1
        %s336 = scalar_select %p335, %s334, 1
        %s337 = smul.addr %s336, 4
        %s338 = scalar_lea.vmem %s3, %s337
        %p339 = pneg %p133
        %p340 = pneg %p130
        %s341 = smul.u32 2, %s27
        %p342 = scmp.lt.s32.totalorder %s341, 1
        %s343 = scalar_select %p342, %s341, 1
        %s344 = scalar_lea.vmem %s4, %s343
        %p345 = pneg %p159
        %p346 = pneg %p156
        %s347 = smul.u32 2, %s27
        %p348 = scmp.lt.s32.totalorder %s347, 1
        %s349 = scalar_select %p348, %s347, 1
        %s350 = scalar_lea.vmem %s5, %s349
        %p351 = pneg %p185
        %p352 = pneg %p182
        %p353 = pneg %p206
        %p354 = pneg %p203
        %p355 = pneg %p232
        %p356 = pneg %p229
        %s357 = sand.u32 %s219, 1
        %s358 = scalar_lea.sflag [#allocation5], %s357
        %s359 = sand.u32 %s219, 1
        %s360 = smul.addr %s359, 32
        %s361 = scalar_lea.vmem [#allocation4], %s360
        %s362 = smul.u32 4, %s26
        %p363 = scmp.lt.s32.totalorder %s362, 7
        %s364 = scalar_select %p363, %s362, 7
        %s365 = smul.addr %s364, 4
        %s366 = scalar_lea.vmem %s0, %s365
        %s367 = smul.u32 4, %s26
        %s368 = smul.u32 4, %s26
        %p369 = scmp.lt.s32.totalorder %s368, 7
        %s370 = scalar_select %p369, %s368, 7
        %s371 = smul.addr %s370, 4
        %s372 = scalar_lea.vmem %s1, %s371
        %s373 = smul.u32 4, %s26
        %s374 = smul.u32 2, %s27
        %p375 = scmp.lt.s32.totalorder %s374, 1
        %s376 = scalar_select %p375, %s374, 1
        %s377 = smul.addr %s376, 4
        %s378 = scalar_lea.vmem %s2, %s377
        %s379 = smul.u32 2, %s27
        %s380 = smul.u32 2, %s27
        %p381 = scmp.lt.s32.totalorder %s380, 1
        %s382 = scalar_select %p381, %s380, 1
        %s383 = smul.addr %s382, 4
        %s384 = scalar_lea.vmem %s3, %s383
        %s385 = smul.u32 2, %s27
        %s386 = smul.u32 2, %s27
        %p387 = scmp.lt.s32.totalorder %s386, 1
        %s388 = scalar_select %p387, %s386, 1
        %s389 = scalar_lea.vmem %s4, %s388
        %s390 = smul.u32 2, %s27
        %s391 = smul.u32 2, %s27
        %p392 = scmp.lt.s32.totalorder %s391, 1
        %s393 = scalar_select %p392, %s391, 1
        %s394 = scalar_lea.vmem %s5, %s393
        %s395 = smul.u32 2, %s27
        %s396 = smul.u32 4, %s26
        %p398 = scmp.eq.s32.totalorder %s27, 0
        // Predicated region
        $region49: #{tpu_custom_call.1} parent=47 // pred_check
          %p399 = pneg %p398
        $region50: #{tpu_custom_call.1} parent=47 // pred_check_branch
          %401 = sbr.rel (%p399) target = $region52
        $region51: #{tpu_custom_call.1} parent=47 // pred_region
          %402 = vst [vmem:[#allocation2] sm:$0xff] 0.0
          %403 = vst [vmem:[#allocation2 + $0x8] sm:$0xff] 0.0
          %404 = vst [vmem:[#allocation2 + $0x10] sm:$0xff] 0.0
          %405 = vst [vmem:[#allocation2 + $0x18] sm:$0xff] 0.0
        $region52: #{tpu_custom_call.1} parent=47 // pred_fallthru
          _
        %v406 = vld [vmem:[%s366] sm:$0xf]
        %v407 = vld [vmem:[%s366 + $0x4] sm:$0xf]
        %v408 = vld [vmem:[%s366 + $0x8] sm:$0xf]
        %v409 = vld [vmem:[%s366 + $0xc] sm:$0xf]
        %v410 = vld [vmem:[%s378] sm:$0xff]
        %v411 = vld [vmem:[%s378 + $0x8] sm:$0xff]
        %v412 = vld [vmem:[%s378 + $0x10] sm:$0xff]
        %v413 = vld [vmem:[%s378 + $0x18] sm:$0xff]
        %v414 = vld [vmem:[%s372] sm:$0xf]
        %v415 = vld [vmem:[%s372 + $0x4] sm:$0xf]
        %v416 = vld [vmem:[%s372 + $0x8] sm:$0xf]
        %v417 = vld [vmem:[%s372 + $0xc] sm:$0xf]
        %v418 = vld [vmem:[%s384] sm:$0xff]
        %v419 = vld [vmem:[%s384 + $0x8] sm:$0xff]
        %v424 = vunpack.c.l.b16 %v414
        %v425 = vunpack.c.l.b16 %v415
        %v426 = vunpack.c.l.b16 %v416
        %v427 = vunpack.c.l.b16 %v417
        %v428 = vpack.c.b16 %v425, %v424
        %v429 = vpack.c.b16 %v427, %v426
        %v432 = vunpack.c.l.b16 %v418
        %v433 = vunpack.c.h.b16 %v418
        %v434 = vunpack.c.l.b16 %v419
        %v435 = vunpack.c.h.b16 %v419
        %v436 = vpack.c.b16 %v434, %v432
        %v437 = vpack.c.b16 %v435, %v433
        %vm440 = vcmask 130048
        %v442 = vsel %vm440, %v428, 0
        %v445 = vsel %vm440, %v429, 0
        %447 = vmatprep.subr.bf16.mxu0 %v437
        %448 = vmatpush1.bf16.msra.mxu0 %v436
        %449 = vmatprep.subr.bf16.mxu0 0
        %450 = vmatpush1.bf16.msra.mxu0 0
        %451 = vmatprep.subr.bf16.mxu0 0
        %452 = vmatpush1.bf16.msra.mxu0 0
        %453 = vmatprep.subr.bf16.mxu0 0
        %454 = vmatpush1.bf16.msra.mxu0 0
        %455 = vmatprep.subr.bf16.mxu0 0
        %456 = vmatpush1.bf16.msra.mxu0 0
        %457 = vmatprep.subr.bf16.mxu0 0
        %458 = vmatpush1.bf16.msra.mxu0 0
        %459 = vmatprep.subr.bf16.mxu0 0
        %460 = vmatpush1.bf16.msra.mxu0 0
        %461 = vmatprep.subr.bf16.mxu0 0
        %462 = vmatpush1.bf16.msra.mxu0 0
        %463 = vmatprep.subr.bf16.mxu0 0
        %464 = vmatpush1.bf16.msra.mxu0 0
        %465 = vmatprep.subr.bf16.mxu0 0
        %466 = vmatpush1.bf16.msra.mxu0 0
        %467 = vmatprep.subr.bf16.mxu0 0
        %468 = vmatpush1.bf16.msra.mxu0 0
        %469 = vmatprep.subr.bf16.mxu0 0
        %470 = vmatpush1.bf16.msra.mxu0 0
        %471 = vmatprep.subr.bf16.mxu0 0
        %472 = vmatpush1.bf16.msra.mxu0 0
        %473 = vmatprep.subr.bf16.mxu0 0
        %474 = vmatpush1.bf16.msra.mxu0 0
        %475 = vmatprep.subr.bf16.mxu0 0
        %476 = vmatpush1.bf16.msra.mxu0 0
        %477 = vmatprep.subr.bf16.mxu0 0
        %478 = vmatpush1.bf16.msra.mxu0 0
        %479 = vmatprep.mubr.bf16.mxu0 0
        %480 = vmatmul.mubr.bf16.gmra.mrb[0].mxu0 %v442
        %v481 = vpop.f32.mrb[0].mxu0
        %v482 = vadd.f32 0.0, %v481
        %v483 = vpop.f32.mrb[0].mxu0
        %v484 = vadd.f32 0.0, %v483
        %v485 = vpop.f32.mrb[0].mxu0
        %v486 = vadd.f32 0.0, %v485
        %v487 = vpop.f32.mrb[0].mxu0
        %v488 = vadd.f32 0.0, %v487
        %489 = vmatprep.mubr.bf16.mxu0 0
        %490 = vmatmul.mubr.bf16.gmra.mrb[0].mxu0 %v445
        %v491 = vpop.f32.mrb[0].mxu0
        %v492 = vadd.f32 0.0, %v491
        %v493 = vpop.f32.mrb[0].mxu0
        %v494 = vadd.f32 0.0, %v493
        %v495 = vpop.f32.mrb[0].mxu0
        %v496 = vadd.f32 0.0, %v495
        %v497 = vpop.f32.mrb[0].mxu0
        %v498 = vadd.f32 0.0, %v497
        %499 = vdwg.mxu0
        %v504 = vunpack.c.l.b16 %v406
        %v505 = vunpack.c.l.b16 %v407
        %v506 = vunpack.c.l.b16 %v408
        %v507 = vunpack.c.l.b16 %v409
        %v508 = vpack.c.b16 %v505, %v504
        %v509 = vpack.c.b16 %v507, %v506
        %v514 = vunpack.c.l.b16 %v410
        %v515 = vunpack.c.h.b16 %v410
        %v516 = vunpack.c.l.b16 %v411
        %v517 = vunpack.c.h.b16 %v411
        %v518 = vunpack.c.l.b16 %v412
        %v519 = vunpack.c.h.b16 %v412
        %v520 = vunpack.c.l.b16 %v413
        %v521 = vunpack.c.h.b16 %v413
        %v522 = vpack.c.b16 %v516, %v514
        %v523 = vpack.c.b16 %v517, %v515
        %v524 = vpack.c.b16 %v520, %v518
        %v525 = vpack.c.b16 %v521, %v519
        %vm530 = vcmask 261120
        %v532 = vsel %vm530, %v508, 0
        %v535 = vsel %vm530, %v509, 0
        %537 = vmatprep.subr.bf16.mxu0 %v523
        %538 = vmatpush1.bf16.msra.mxu0 %v522
        %539 = vmatprep.subr.bf16.mxu0 %v525
        %540 = vmatpush1.bf16.msra.mxu0 %v524
        %541 = vmatprep.subr.bf16.mxu0 0
        %542 = vmatpush1.bf16.msra.mxu0 0
        %543 = vmatprep.subr.bf16.mxu0 0
        %544 = vmatpush1.bf16.msra.mxu0 0
        %545 = vmatprep.subr.bf16.mxu0 0
        %546 = vmatpush1.bf16.msra.mxu0 0
        %547 = vmatprep.subr.bf16.mxu0 0
        %548 = vmatpush1.bf16.msra.mxu0 0
        %549 = vmatprep.subr.bf16.mxu0 0
        %550 = vmatpush1.bf16.msra.mxu0 0
        %551 = vmatprep.subr.bf16.mxu0 0
        %552 = vmatpush1.bf16.msra.mxu0 0
        %553 = vmatprep.subr.bf16.mxu0 0
        %554 = vmatpush1.bf16.msra.mxu0 0
        %555 = vmatprep.subr.bf16.mxu0 0
        %556 = vmatpush1.bf16.msra.mxu0 0
        %557 = vmatprep.subr.bf16.mxu0 0
        %558 = vmatpush1.bf16.msra.mxu0 0
        %559 = vmatprep.subr.bf16.mxu0 0
        %560 = vmatpush1.bf16.msra.mxu0 0
        %561 = vmatprep.subr.bf16.mxu0 0
        %562 = vmatpush1.bf16.msra.mxu0 0
        %563 = vmatprep.subr.bf16.mxu0 0
        %564 = vmatpush1.bf16.msra.mxu0 0
        %565 = vmatprep.subr.bf16.mxu0 0
        %566 = vmatpush1.bf16.msra.mxu0 0
        %567 = vmatprep.subr.bf16.mxu0 0
        %568 = vmatpush1.bf16.msra.mxu0 0
        %569 = vmatprep.mubr.bf16.mxu0 0
        %570 = vmatmul.mubr.bf16.gmra.mrb[0].mxu0 %v532
        %v571 = vpop.f32.mrb[0].mxu0
        %v572 = vadd.f32 %v482, %v571
        %v573 = vpop.f32.mrb[0].mxu0
        %v574 = vadd.f32 %v484, %v573
        %v575 = vpop.f32.mrb[0].mxu0
        %v576 = vadd.f32 %v486, %v575
        %v577 = vpop.f32.mrb[0].mxu0
        %v578 = vadd.f32 %v488, %v577
        %579 = vmatprep.mubr.bf16.mxu0 0
        %580 = vmatmul.mubr.bf16.gmra.mrb[0].mxu0 %v535
        %v581 = vpop.f32.mrb[0].mxu0
        %v582 = vadd.f32 %v492, %v581
        %v583 = vpop.f32.mrb[0].mxu0
        %v584 = vadd.f32 %v494, %v583
        %v585 = vpop.f32.mrb[0].mxu0
        %v586 = vadd.f32 %v496, %v585
        %v587 = vpop.f32.mrb[0].mxu0
        %v588 = vadd.f32 %v498, %v587
        %589 = vdwg.mxu0
        %v590 = vld [vmem:[%s389] sm:$0x3]
        %v592 = vlaneseq
        %v593 = vshrl.u32 %v592, 7
        %v594 = vsub.s32 0, %v593
        %v595 = vrot.slane %v590, %v594
        %v596 = vlaneseq
        %v597 = vshrl.u32 %v596, 7
        %v598 = vsub.s32 1, %v597
        %v599 = vrot.slane %v590, %v598
        %v602 = vadd.f32 %v572, %v595
        %v603 = vadd.f32 %v574, %v599
        %v604 = vadd.f32 %v576, %v595
        %v605 = vadd.f32 %v578, %v599
        %v606 = vadd.f32 %v582, %v595
        %v607 = vadd.f32 %v584, %v599
        %v608 = vadd.f32 %v586, %v595
        %v609 = vadd.f32 %v588, %v599
        %v610 = vmul.f32 %v602, 0.2
        %v611 = vmul.f32 %v603, 0.2
        %v612 = vmul.f32 %v604, 0.2
        %v613 = vmul.f32 %v605, 0.2
        %v614 = vmul.f32 %v606, 0.2
        %v615 = vmul.f32 %v607, 0.2
        %v616 = vmul.f32 %v608, 0.2
        %v617 = vmul.f32 %v609, 0.2
        %v618 = vmax.f32 %v602, %v610
        %v619 = vmax.f32 %v603, %v611
        %v620 = vmax.f32 %v604, %v612
        %v621 = vmax.f32 %v605, %v613
        %v622 = vmax.f32 %v606, %v614
        %v623 = vmax.f32 %v607, %v615
        %v624 = vmax.f32 %v608, %v616
        %v625 = vmax.f32 %v609, %v617
        %v626 = vld [vmem:[%s394] sm:$0x3]
        %v628 = vlaneseq
        %v629 = vshrl.u32 %v628, 7
        %v630 = vsub.s32 0, %v629
        %v631 = vrot.slane %v626, %v630
        %v632 = vlaneseq
        %v633 = vshrl.u32 %v632, 7
        %v634 = vsub.s32 1, %v633
        %v635 = vrot.slane %v626, %v634
        %v638 = vmul.f32 %v618, %v631
        %v639 = vmul.f32 %v619, %v635
        %v640 = vmul.f32 %v620, %v631
        %v641 = vmul.f32 %v621, %v635
        %v642 = vmul.f32 %v622, %v631
        %v643 = vmul.f32 %v623, %v635
        %v644 = vmul.f32 %v624, %v631
        %v645 = vmul.f32 %v625, %v635
        %v646 = vadd.f32 %v638, %v639
        %v647 = vadd.f32 %v640, %v641
        %v648 = vadd.f32 %v642, %v643
        %v649 = vadd.f32 %v644, %v645
        %v650 = vld [vmem:[#allocation2] sm:$0xff]
        %v651 = vld [vmem:[#allocation2 + $0x8] sm:$0xff]
        %v652 = vld [vmem:[#allocation2 + $0x10] sm:$0xff]
        %v653 = vld [vmem:[#allocation2 + $0x18] sm:$0xff]
        %v654 = vadd.f32 %v650, %v646
        %v655 = vadd.f32 %v651, %v647
        %v656 = vadd.f32 %v652, %v648
        %v657 = vadd.f32 %v653, %v649
        %658 = vst [vmem:[#allocation2] sm:$0xff] %v654
        %659 = vst [vmem:[#allocation2 + $0x8] sm:$0xff] %v655
        %660 = vst [vmem:[#allocation2 + $0x10] sm:$0xff] %v656
        %661 = vst [vmem:[#allocation2 + $0x18] sm:$0xff] %v657
        // Predicated region
        $region53: #{tpu_custom_call.1} parent=47 // pred_check
          %p662 = pneg %p398
        $region54: #{tpu_custom_call.1} parent=47 // pred_check_branch
          %664 = sbr.rel (%p662) target = $region56
        $region55: #{tpu_custom_call.1} parent=47 // pred_region
          %v665 = vld [vmem:[#allocation2] sm:$0xff]
          %v666 = vld [vmem:[#allocation2 + $0x8] sm:$0xff]
          %v667 = vld [vmem:[#allocation2 + $0x10] sm:$0xff]
          %v668 = vld [vmem:[#allocation2 + $0x18] sm:$0xff]
          %669 = vadd.xlane.f32.xlu0 %v665
          %v670 = vpop.xlane.xlu0 %669
          %671 = vadd.xlane.f32.xlu0 %v666
          %v672 = vpop.xlane.xlu0 %671
          %673 = vadd.xlane.f32.xlu0 %v667
          %v674 = vpop.xlane.xlu0 %673
          %675 = vadd.xlane.f32.xlu0 %v668
          %v676 = vpop.xlane.xlu0 %675
          %s677 = sld [smem:[#allocation3]]
          %v678 = vstv %s677
          %v679 = vadd.f32 %v670, %v678
          %v680 = vadd.f32 %v672, %v678
          %v681 = vadd.f32 %v674, %v678
          %v682 = vadd.f32 %v676, %v678
          %683 = vst [vmem:[%s361] sm:$0xff] %v679
          %684 = vst [vmem:[%s361 + $0x8] sm:$0xff] %v680
          %685 = vst [vmem:[%s361 + $0x10] sm:$0xff] %v681
          %686 = vst [vmem:[%s361 + $0x18] sm:$0xff] %v682
        $region56: #{tpu_custom_call.1} parent=47 // pred_fallthru
          _
        %s687 = sand.u32 %s219, 1
        %s688 = scalar_lea.sflag [#allocation5], %s687
        %s689 = sand.u32 %s219, 1
        %s690 = smul.addr %s689, 32
        %s691 = scalar_lea.vmem [#allocation4], %s690
        // Predicated region
        $region57: #{tpu_custom_call.1} parent=47 // pred_check
          %p692 = pneg %p229
        $region58: #{tpu_custom_call.1} parent=47 // pred_check_branch
          %694 = sbr.rel (%p692) target = $region60
        $region59: #{tpu_custom_call.1} parent=47 // pred_region
          %s695 = smul.u32 4, %s26
          %s697 = ssub.s32 512, 512
          %698 = vsyncadd %s688, %s697
          %s699 = smul.addr %s695, 128
          %s700 = scalar_lea.hbm %s7, %s699
          %s701 = sshll.u32 %s691, 4
          %s702 = int_to_ptr.vmem [resolvable:$true] %s701
          %707 = dma.vmem_to_hbm [thread:$0]  %s702, 512, %s700, %s688, 128, 128, 8
        $region60: #{tpu_custom_call.1} parent=47 // pred_fallthru
          _
      $region48: #{tpu_custom_call.1} parent=5 // pred_fallthru
        _
      %p708 = scmp.le.s32.totalorder 2, %s17
      // Predicated region
      $region61: #{tpu_custom_call.1} parent=5 // pred_check
        %p709 = pneg %p708
      $region62: #{tpu_custom_call.1} parent=5 // pred_check_branch
        %711 = sbr.rel (%p709) target = $region64
      $region63: #{tpu_custom_call.1} parent=5 // pred_region
        %s712 = ssub.s32 %s17, 2
        // Predicated region
        $region65: #{tpu_custom_call.1} parent=63 // pred_check
          %p713 = pneg %p235
        $region66: #{tpu_custom_call.1} parent=63 // pred_check_branch
          %715 = sbr.rel (%p713) target = $region68
        $region67: #{tpu_custom_call.1} parent=63 // pred_region
          %s716 = sand.u32 %s220, 1
          %s717 = scalar_lea.sflag [#allocation5], %s716
          %s718 = sand.u32 %s220, 1
          %s719 = smul.addr %s718, 32
          %s720 = scalar_lea.vmem [#allocation4], %s719
          %721 = dma.done %s717, 512
        $region68: #{tpu_custom_call.1} parent=63 // pred_fallthru
          _
      $region64: #{tpu_custom_call.1} parent=5 // pred_fallthru
        _
    $region6: #{tpu_custom_call.1} parent=1 // loop_footer
      %s21 = sadd.s32 1, %s17
    $region7: #{tpu_custom_call.1} parent=1 // loop_footer_branch
      %16 = sbr.rel target = $region3
    $region8: #{tpu_custom_call.1} parent=1 // loop_exit
      _
    %722 = vsyncpa [#allocation5], 1
    %s723 = scalar_lea.sflag [#allocation5], 1
    %724 = vsyncpa %s723, 1

</llo_original>
